<compile_context>
chip_gen: v5e
topology: v5e:2x2
jax: 0.10.0
libtpu: 0.0.40
codegen_flags: <defaults>
</compile_context>

<pallas_src>
import math

import jax
import jax.numpy as jnp
from jax import lax
from jax.experimental import pallas as pl
from jax.experimental.pallas import tpu as pltpu

_LANE = 128
_SUBLANE = 8


def _round_up(x, m):
    return ((x + m - 1) // m) * m


def _make_evg_kernel(*, input_dim, hidden_dim, hidden_pad, out_dim,
                     bqkv_row, bo_row, n_entities, top_k):
    D, Hp = input_dim, hidden_pad
    scale = 1.0 / math.sqrt(hidden_dim)

    def evg_kernel(cls_ref, ent_ref, w_ref, out_ref):
        # cls_ref : (TB, D)              per-grid-step tile of class embeddings
        # ent_ref : (N, D)               entity table (constant index_map -> resident)
        # w_ref   : (R, 3*Hp + out_dim)  packed weight slab (constant index_map -> resident)
        cls = cls_ref[...]
        ent = ent_ref[...]

        # All slab slices start at sublane-/lane-aligned offsets -> free views.
        wq = w_ref[0:D, 0:Hp]
        wkv = w_ref[0:D, Hp:3 * Hp]
        bq = w_ref[bqkv_row:bqkv_row + 1, 0:Hp]
        bkv = w_ref[bqkv_row:bqkv_row + 1, Hp:3 * Hp]
        wo = w_ref[0:Hp, 3 * Hp:3 * Hp + out_dim]
        bo = w_ref[bo_row:bo_row + 1, 3 * Hp:3 * Hp + out_dim]

        # Projections (MXU, f32 accumulation).  K/V are recomputed per grid step on
        # purpose: the batch axis is "parallel" (megacore-shardable on v7x), so we
        # cannot rely on a pid==0 init step; at this size the extra MXU work is free.
        q = jnp.dot(cls, wq, preferred_element_type=jnp.float32) + bq       # (TB, Hp)
        kv = jnp.dot(ent, wkv, preferred_element_type=jnp.float32) + bkv    # (N, 2*Hp)
        k_mat = kv[:, 0:Hp]              # lane offset 0   (aligned)
        v_mat = kv[:, Hp:2 * Hp]         # lane offset 128 (aligned)

        # Scaled dot-product logits; contract last dims (no materialized transpose).
        logits = lax.dot_general(
            q, k_mat, dimension_numbers=(((1,), (1,)), ((), ())),
            preferred_element_type=jnp.float32) * scale                      # (TB, N)

        # Deferred softmax normalization: top-k selection is invariant to the positive
        # 1/sum scale, so select on the unnormalized exp and divide once at the end.
        m = jnp.max(logits, axis=-1, keepdims=True)
        p = jnp.exp(logits - m)                                              # (TB, N)
        l = jnp.sum(p, axis=-1, keepdims=True)                               # (TB, 1)

        # Top-k: accumulate selected (unnormalized) scores into a sparse (TB, N) weight
        # vector; ONE matmul with V afterwards does the weighted sum.  First-index
        # tie-break matches torch.topk.  top_k is a small compile-time constant.
        iota = lax.broadcasted_iota(jnp.int32, p.shape, 1)
        work = p
        sel = jnp.zeros_like(p)
        for _ in range(top_k):
            mv = jnp.max(work, axis=-1, keepdims=True)
            cand = work == mv
            first = jnp.min(jnp.where(cand, iota, n_entities), axis=-1, keepdims=True)
            onehot = iota == first
            sel = sel + jnp.where(onehot, p, 0.0)
            work = jnp.where(onehot, -jnp.inf, work)

        weighted = jnp.dot(sel, v_mat, preferred_element_type=jnp.float32)   # (TB, Hp)
        weighted = weighted * pl.reciprocal(l, approx=False)                 # exact 1/sum

        out_ref[...] = (jnp.dot(weighted, wo, preferred_element_type=jnp.float32) + bo)

    return evg_kernel


def pack_evg_params(params):
    """One-time, host-side packing of all weights + biases into ONE lane/sublane-aligned
    slab so the kernel takes a single weight input (one DMA, resident across the grid)."""
    wq, wk, wv, wo = params["wq"], params["wk"], params["wv"], params["wo"]
    bq, bk, bv, bo = params["bq"], params["bk"], params["bv"], params["bo"]
    D, H = wq.shape
    out_dim = wo.shape[1]
    Hp = _round_up(H, _LANE)                 # each projection gets its own 128-lane block
    bqkv_row = _round_up(D, _SUBLANE)        # QKV bias row (sublane-aligned)
    bo_row = _round_up(max(Hp, bqkv_row + 1), _SUBLANE)
    R = bo_row + 1
    C = 3 * Hp + out_dim

    slab = jnp.zeros((R, C), jnp.float32)
    slab = slab.at[0:D, 0:H].set(wq.astype(jnp.float32))
    slab = slab.at[0:D, Hp:Hp + H].set(wk.astype(jnp.float32))
    slab = slab.at[0:D, 2 * Hp:2 * Hp + H].set(wv.astype(jnp.float32))
    slab = slab.at[bqkv_row, 0:H].set(bq[0].astype(jnp.float32))
    slab = slab.at[bqkv_row, Hp:Hp + H].set(bk[0].astype(jnp.float32))
    slab = slab.at[bqkv_row, 2 * Hp:2 * Hp + H].set(bv[0].astype(jnp.float32))
    slab = slab.at[0:H, 3 * Hp:3 * Hp + out_dim].set(wo.astype(jnp.float32))
    slab = slab.at[bo_row, 3 * Hp:3 * Hp + out_dim].set(bo[0].astype(jnp.float32))
    # TODO(synk): at batched scale on v6e/v7x, store the slab + entity table in bf16 to
    # halve DMA bytes (keep softmax/top-k math in f32); on v7x a quantized table would
    # have to target fp8 (no int MXU path).
    return dict(slab=slab, input_dim=D, hidden_dim=H, hidden_pad=Hp,
                out_dim=out_dim, bqkv_row=bqkv_row, bo_row=bo_row)


def evg_forward(class_embeddings, entity_embeddings, packed, *, top_k):
    """class_embeddings: (D,) or (B, D); entity_embeddings: (N, D).
    Returns (out_dim,) or (B, out_dim)."""
    single = class_embeddings.ndim == 1
    cls = class_embeddings[None, :] if single else class_embeddings
    cls = cls.astype(jnp.float32)
    ent = entity_embeddings.astype(jnp.float32)
    B, D = cls.shape
    N = ent.shape[0]
    out_dim = packed["out_dim"]
    Hp = packed["hidden_pad"]
    k = min(top_k, N)  # torch parity guard (also keeps a finite entry each top-k step)

    # Batch tile: one sublane tile (8 rows) when divisible, else the whole batch.
    TB = 8 if (B % 8 == 0) else B
    n_steps = B // TB

    kernel = _make_evg_kernel(
        input_dim=D, hidden_dim=packed["hidden_dim"], hidden_pad=Hp, out_dim=out_dim,
        bqkv_row=packed["bqkv_row"], bo_row=packed["bo_row"], n_entities=N, top_k=k)

    slab = packed["slab"]
    flops = n_steps * (2 * TB * D * Hp          # Q projection
                       + 2 * N * D * 2 * Hp     # K/V projection (recomputed per step)
                       + 4 * TB * N * Hp        # logits + weighted sum
                       + 2 * TB * Hp * out_dim)  # output projection
    bytes_accessed = 4 * (cls.size + ent.size + slab.size + B * out_dim)

    out = pl.pallas_call(
        kernel,
        out_shape=jax.ShapeDtypeStruct((B, out_dim), jnp.float32),
        grid=(n_steps,),
        in_specs=[
            pl.BlockSpec((TB, D), lambda b: (b, 0)),       # per-item queries (pipelined)
            pl.BlockSpec((N, D), lambda b: (0, 0)),        # entity table: VMEM-resident
            pl.BlockSpec(slab.shape, lambda b: (0, 0)),    # packed weights: VMEM-resident
        ],
        out_specs=pl.BlockSpec((TB, out_dim), lambda b: (b, 0)),
        compiler_params=pltpu.CompilerParams(dimension_semantics=("parallel",)),
        cost_estimate=pl.CostEstimate(flops=flops, transcendentals=B * N,
                                      bytes_accessed=bytes_accessed),
    )(cls, ent, slab)
    # TODO(synk): if N_ENTITIES grows large, tile the entity axis with a grid + online
    # softmax/top-k and set vmem_limit_bytes explicitly (v7x has only 64 MiB VMEM).
    return out[0] if single else out


def init_params(key, input_dim, hidden_dim, output_dim):
    """Deterministic synthetic parameters in (in, out) layout; biases as (1, out)."""
    ks = jax.random.split(key, 8)

    def lin(kw, kb, fan_in, fan_out):
        bound = 1.0 / math.sqrt(fan_in)
        w = jax.random.uniform(kw, (fan_in, fan_out), jnp.float32, -bound, bound)
        b = jax.random.uniform(kb, (1, fan_out), jnp.float32, -bound, bound)
        return w, b

    wq, bq = lin(ks[0], ks[1], input_dim, hidden_dim)
    wk, bk = lin(ks[2], ks[3], input_dim, hidden_dim)
    wv, bv = lin(ks[4], ks[5], input_dim, hidden_dim)
    wo, bo = lin(ks[6], ks[7], hidden_dim, output_dim)
    return dict(wq=wq, bq=bq, wk=wk, bk=bk, wv=wv, bv=bv, wo=wo, bo=bo)


def evg_reference(class_embedding, entity_embeddings, params, *, hidden_dim, top_k):
    """Pure-JAX reference mirroring the PyTorch forward exactly (single item)."""
    q = class_embedding @ params["wq"] + params["bq"][0]                 # (H,)
    k = entity_embeddings @ params["wk"] + params["bk"]                  # (N, H)
    v = entity_embeddings @ params["wv"] + params["bv"]                  # (N, H)
    logits = (q[None, :] @ k.T) / math.sqrt(hidden_dim)                  # (1, N)
    scores = jax.nn.softmax(logits, axis=-1)
    kk = min(top_k, scores.shape[-1])
    topk_scores, topk_idx = jax.lax.top_k(scores[0], kk)
    topk_values = v[topk_idx]                                            # (k, H)
    weighted_sum = jnp.sum(topk_values * topk_scores[:, None], axis=0)   # (H,)
    return weighted_sum @ params["wo"] + params["bo"][0]                 # (out_dim,)


if __name__ == "__main__":
    INPUT_DIM, HIDDEN_DIM, OUTPUT_DIM = 32, 32, 32
    N_ENTITIES, TOP_K, BATCH = 20, 5, 16

    key = jax.random.PRNGKey(0)
    k_cls, k_ent, k_par = jax.random.split(key, 3)

    class_embeddings = jax.random.normal(k_cls, (BATCH, INPUT_DIM), jnp.float32)
    entity_embeddings = jax.random.normal(k_ent, (N_ENTITIES, INPUT_DIM), jnp.float32)
    params = init_params(k_par, INPUT_DIM, HIDDEN_DIM, OUTPUT_DIM)
    packed = pack_evg_params(params)   # one-time weight packing (outside the hot path)

    # Batched path: B independent class embeddings against the same entity table.
    out = evg_forward(class_embeddings, entity_embeddings, packed, top_k=TOP_K)
    out = jax.block_until_ready(out)

    ref = jax.vmap(lambda c: evg_reference(c, entity_embeddings, params,
                                           hidden_dim=HIDDEN_DIM, top_k=TOP_K))(class_embeddings)
    assert out.shape == (BATCH, OUTPUT_DIM)
    assert jnp.allclose(out, ref, atol=1e-4, rtol=1e-4), (out, ref)

    # Single-item path (the original module contract: (D,) -> (out_dim,)).
    out1 = jax.block_until_ready(
        evg_forward(class_embeddings[0], entity_embeddings, packed, top_k=TOP_K))
    ref1 = evg_reference(class_embeddings[0], entity_embeddings, params,
                         hidden_dim=HIDDEN_DIM, top_k=TOP_K)
    assert out1.shape == (OUTPUT_DIM,)
    assert jnp.allclose(out1, ref1, atol=1e-4, rtol=1e-4), (out1, ref1)

    print("KERNEL_OK")
</pallas_src>

<mosaic_0001>
module attributes {stable_mosaic.version = 11 : i64} {
  func.func @evg_kernel(%arg0: i32, %arg1: memref<8x32xf32, #tpu.memory_space<vmem>>, %arg2: memref<20x32xf32, #tpu.memory_space<vmem>>, %arg3: memref<129x416xf32, #tpu.memory_space<vmem>>, %arg4: memref<8x32xf32, #tpu.memory_space<vmem>>) attributes {dimension_semantics = [#tpu.dimension_semantics<parallel>], iteration_bounds = array<i64: 2>, scalar_prefetch = 0 : i64, scratch_operands = 0 : i64, tpu.core_type = #tpu.core_type<tc>, window_params = [{transform_indices = @transform_0, window_bounds = array<i64: 8, 32>}, {pipeline_mode = #tpu.pipeline_mode<synchronous>, transform_indices = @transform_1, window_bounds = array<i64: 20, 32>}, {pipeline_mode = #tpu.pipeline_mode<synchronous>, transform_indices = @transform_2, window_bounds = array<i64: 129, 416>}, {transform_indices = @transform_3, window_bounds = array<i64: 8, 32>}]} {
    %c0 = arith.constant 0 : index
    %c0_0 = arith.constant 0 : index
    %0 = vector.load %arg1[%c0, %c0_0] : memref<8x32xf32, #tpu.memory_space<vmem>>, vector<8x32xf32>
    %c0_1 = arith.constant 0 : index
    %c0_2 = arith.constant 0 : index
    %1 = vector.load %arg2[%c0_1, %c0_2] : memref<20x32xf32, #tpu.memory_space<vmem>>, vector<20x32xf32>
    %c0_3 = arith.constant 0 : index
    %c0_4 = arith.constant 0 : index
    %2 = vector.load %arg3[%c0_3, %c0_4] : memref<129x416xf32, #tpu.memory_space<vmem>>, vector<32x128xf32>
    %c0_5 = arith.constant 0 : index
    %c128 = arith.constant 128 : index
    %3 = vector.load %arg3[%c0_5, %c128] : memref<129x416xf32, #tpu.memory_space<vmem>>, vector<32x256xf32>
    %c32 = arith.constant 32 : index
    %c0_6 = arith.constant 0 : index
    %4 = vector.load %arg3[%c32, %c0_6] : memref<129x416xf32, #tpu.memory_space<vmem>>, vector<1x128xf32>
    %c32_7 = arith.constant 32 : index
    %c128_8 = arith.constant 128 : index
    %5 = vector.load %arg3[%c32_7, %c128_8] : memref<129x416xf32, #tpu.memory_space<vmem>>, vector<1x256xf32>
    %c0_9 = arith.constant 0 : index
    %c384 = arith.constant 384 : index
    %6 = vector.load %arg3[%c0_9, %c384] : memref<129x416xf32, #tpu.memory_space<vmem>>, vector<128x32xf32>
    %c128_10 = arith.constant 128 : index
    %c384_11 = arith.constant 384 : index
    %7 = vector.load %arg3[%c128_10, %c384_11] : memref<129x416xf32, #tpu.memory_space<vmem>>, vector<1x32xf32>
    %cst = arith.constant dense<0.000000e+00> : vector<8x128xf32>
    %8 = tpu.matmul %0, %2, %cst {dimension_numbers = #tpu.dot_dimension_numbers<[1], [0], [0], [1], [0, 0, 1, 1], [], []>} : vector<8x32xf32>, vector<32x128xf32>, vector<8x128xf32> -> vector<8x128xf32>
    %9 = vector.broadcast %4 : vector<1x128xf32> to vector<8x128xf32>
    %10 = arith.addf %8, %9 : vector<8x128xf32>
    %cst_12 = arith.constant dense<0.000000e+00> : vector<20x256xf32>
    %11 = tpu.matmul %1, %3, %cst_12 {dimension_numbers = #tpu.dot_dimension_numbers<[1], [0], [0], [1], [0, 0, 1, 1], [], []>} : vector<20x32xf32>, vector<32x256xf32>, vector<20x256xf32> -> vector<20x256xf32>
    %12 = vector.broadcast %5 : vector<1x256xf32> to vector<20x256xf32>
    %13 = arith.addf %11, %12 : vector<20x256xf32>
    %14 = vector.extract_strided_slice %13 {offsets = [0, 0], sizes = [20, 128], strides = [1, 1]} : vector<20x256xf32> to vector<20x128xf32>
    %15 = vector.extract_strided_slice %13 {offsets = [0, 128], sizes = [20, 128], strides = [1, 1]} : vector<20x256xf32> to vector<20x128xf32>
    %cst_13 = arith.constant dense<0.000000e+00> : vector<8x20xf32>
    %16 = tpu.matmul %10, %14, %cst_13 {dimension_numbers = #tpu.dot_dimension_numbers<[1], [1], [0], [0], [0, 0, 1, 0], [], []>} : vector<8x128xf32>, vector<20x128xf32>, vector<8x20xf32> -> vector<8x20xf32>
    %cst_14 = arith.constant 0.176776692 : f32
    %17 = vector.broadcast %cst_14 : f32 to vector<8x20xf32>
    %18 = arith.mulf %16, %17 : vector<8x20xf32>
    %cst_15 = arith.constant dense<0xFF800000> : vector<8xf32>
    %19 = vector.multi_reduction <maximumf>, %18, %cst_15 [1] : vector<8x20xf32> to vector<8xf32>
    %20 = vector.shape_cast %19 : vector<8xf32> to vector<8x1xf32>
    %21 = vector.broadcast %20 : vector<8x1xf32> to vector<8x20xf32>
    %22 = arith.subf %18, %21 : vector<8x20xf32>
    %23 = math.exp %22 : vector<8x20xf32>
    %cst_16 = arith.constant dense<0.000000e+00> : vector<8xf32>
    %24 = vector.multi_reduction <add>, %23, %cst_16 [1] : vector<8x20xf32> to vector<8xf32>
    %25 = vector.shape_cast %24 : vector<8xf32> to vector<8x1xf32>
    %26 = tpu.iota {dimensions = array<i32: 1>} : vector<8x20xi32>
    %cst_17 = arith.constant 0.000000e+00 : f32
    %27 = vector.broadcast %cst_17 : f32 to vector<8x20xf32>
    %cst_18 = arith.constant dense<0xFF800000> : vector<8xf32>
    %28 = vector.multi_reduction <maximumf>, %23, %cst_18 [1] : vector<8x20xf32> to vector<8xf32>
    %29 = vector.shape_cast %28 : vector<8xf32> to vector<8x1xf32>
    %30 = vector.broadcast %29 : vector<8x1xf32> to vector<8x20xf32>
    %31 = arith.cmpf oeq, %23, %30 : vector<8x20xf32>
    %c20_i32 = arith.constant 20 : i32
    %32 = vector.broadcast %c20_i32 : i32 to vector<8x20xi32>
    %33 = arith.select %31, %26, %32 : vector<8x20xi1>, vector<8x20xi32>
    %cst_19 = arith.constant dense<2147483647> : vector<8xi32>
    %34 = vector.multi_reduction <minsi>, %33, %cst_19 [1] : vector<8x20xi32> to vector<8xi32>
    %35 = vector.shape_cast %34 : vector<8xi32> to vector<8x1xi32>
    %36 = vector.broadcast %35 : vector<8x1xi32> to vector<8x20xi32>
    %37 = arith.cmpi eq, %26, %36 : vector<8x20xi32>
    %cst_20 = arith.constant 0.000000e+00 : f32
    %38 = vector.broadcast %cst_20 : f32 to vector<8x20xf32>
    %39 = arith.select %37, %23, %38 : vector<8x20xi1>, vector<8x20xf32>
    %40 = arith.addf %27, %39 : vector<8x20xf32>
    %cst_21 = arith.constant 0xFF800000 : f32
    %41 = vector.broadcast %cst_21 : f32 to vector<8x20xf32>
    %42 = arith.select %37, %41, %23 : vector<8x20xi1>, vector<8x20xf32>
    %cst_22 = arith.constant dense<0xFF800000> : vector<8xf32>
    %43 = vector.multi_reduction <maximumf>, %42, %cst_22 [1] : vector<8x20xf32> to vector<8xf32>
    %44 = vector.shape_cast %43 : vector<8xf32> to vector<8x1xf32>
    %45 = vector.broadcast %44 : vector<8x1xf32> to vector<8x20xf32>
    %46 = arith.cmpf oeq, %42, %45 : vector<8x20xf32>
    %c20_i32_23 = arith.constant 20 : i32
    %47 = vector.broadcast %c20_i32_23 : i32 to vector<8x20xi32>
    %48 = arith.select %46, %26, %47 : vector<8x20xi1>, vector<8x20xi32>
    %cst_24 = arith.constant dense<2147483647> : vector<8xi32>
    %49 = vector.multi_reduction <minsi>, %48, %cst_24 [1] : vector<8x20xi32> to vector<8xi32>
    %50 = vector.shape_cast %49 : vector<8xi32> to vector<8x1xi32>
    %51 = vector.broadcast %50 : vector<8x1xi32> to vector<8x20xi32>
    %52 = arith.cmpi eq, %26, %51 : vector<8x20xi32>
    %cst_25 = arith.constant 0.000000e+00 : f32
    %53 = vector.broadcast %cst_25 : f32 to vector<8x20xf32>
    %54 = arith.select %52, %23, %53 : vector<8x20xi1>, vector<8x20xf32>
    %55 = arith.addf %40, %54 : vector<8x20xf32>
    %cst_26 = arith.constant 0xFF800000 : f32
    %56 = vector.broadcast %cst_26 : f32 to vector<8x20xf32>
    %57 = arith.select %52, %56, %42 : vector<8x20xi1>, vector<8x20xf32>
    %cst_27 = arith.constant dense<0xFF800000> : vector<8xf32>
    %58 = vector.multi_reduction <maximumf>, %57, %cst_27 [1] : vector<8x20xf32> to vector<8xf32>
    %59 = vector.shape_cast %58 : vector<8xf32> to vector<8x1xf32>
    %60 = vector.broadcast %59 : vector<8x1xf32> to vector<8x20xf32>
    %61 = arith.cmpf oeq, %57, %60 : vector<8x20xf32>
    %c20_i32_28 = arith.constant 20 : i32
    %62 = vector.broadcast %c20_i32_28 : i32 to vector<8x20xi32>
    %63 = arith.select %61, %26, %62 : vector<8x20xi1>, vector<8x20xi32>
    %cst_29 = arith.constant dense<2147483647> : vector<8xi32>
    %64 = vector.multi_reduction <minsi>, %63, %cst_29 [1] : vector<8x20xi32> to vector<8xi32>
    %65 = vector.shape_cast %64 : vector<8xi32> to vector<8x1xi32>
    %66 = vector.broadcast %65 : vector<8x1xi32> to vector<8x20xi32>
    %67 = arith.cmpi eq, %26, %66 : vector<8x20xi32>
    %cst_30 = arith.constant 0.000000e+00 : f32
    %68 = vector.broadcast %cst_30 : f32 to vector<8x20xf32>
    %69 = arith.select %67, %23, %68 : vector<8x20xi1>, vector<8x20xf32>
    %70 = arith.addf %55, %69 : vector<8x20xf32>
    %cst_31 = arith.constant 0xFF800000 : f32
    %71 = vector.broadcast %cst_31 : f32 to vector<8x20xf32>
    %72 = arith.select %67, %71, %57 : vector<8x20xi1>, vector<8x20xf32>
    %cst_32 = arith.constant dense<0xFF800000> : vector<8xf32>
    %73 = vector.multi_reduction <maximumf>, %72, %cst_32 [1] : vector<8x20xf32> to vector<8xf32>
    %74 = vector.shape_cast %73 : vector<8xf32> to vector<8x1xf32>
    %75 = vector.broadcast %74 : vector<8x1xf32> to vector<8x20xf32>
    %76 = arith.cmpf oeq, %72, %75 : vector<8x20xf32>
    %c20_i32_33 = arith.constant 20 : i32
    %77 = vector.broadcast %c20_i32_33 : i32 to vector<8x20xi32>
    %78 = arith.select %76, %26, %77 : vector<8x20xi1>, vector<8x20xi32>
    %cst_34 = arith.constant dense<2147483647> : vector<8xi32>
    %79 = vector.multi_reduction <minsi>, %78, %cst_34 [1] : vector<8x20xi32> to vector<8xi32>
    %80 = vector.shape_cast %79 : vector<8xi32> to vector<8x1xi32>
    %81 = vector.broadcast %80 : vector<8x1xi32> to vector<8x20xi32>
    %82 = arith.cmpi eq, %26, %81 : vector<8x20xi32>
    %cst_35 = arith.constant 0.000000e+00 : f32
    %83 = vector.broadcast %cst_35 : f32 to vector<8x20xf32>
    %84 = arith.select %82, %23, %83 : vector<8x20xi1>, vector<8x20xf32>
    %85 = arith.addf %70, %84 : vector<8x20xf32>
    %cst_36 = arith.constant 0xFF800000 : f32
    %86 = vector.broadcast %cst_36 : f32 to vector<8x20xf32>
    %87 = arith.select %82, %86, %72 : vector<8x20xi1>, vector<8x20xf32>
    %cst_37 = arith.constant dense<0xFF800000> : vector<8xf32>
    %88 = vector.multi_reduction <maximumf>, %87, %cst_37 [1] : vector<8x20xf32> to vector<8xf32>
    %89 = vector.shape_cast %88 : vector<8xf32> to vector<8x1xf32>
    %90 = vector.broadcast %89 : vector<8x1xf32> to vector<8x20xf32>
    %91 = arith.cmpf oeq, %87, %90 : vector<8x20xf32>
    %c20_i32_38 = arith.constant 20 : i32
    %92 = vector.broadcast %c20_i32_38 : i32 to vector<8x20xi32>
    %93 = arith.select %91, %26, %92 : vector<8x20xi1>, vector<8x20xi32>
    %cst_39 = arith.constant dense<2147483647> : vector<8xi32>
    %94 = vector.multi_reduction <minsi>, %93, %cst_39 [1] : vector<8x20xi32> to vector<8xi32>
    %95 = vector.shape_cast %94 : vector<8xi32> to vector<8x1xi32>
    %96 = vector.broadcast %95 : vector<8x1xi32> to vector<8x20xi32>
    %97 = arith.cmpi eq, %26, %96 : vector<8x20xi32>
    %cst_40 = arith.constant 0.000000e+00 : f32
    %98 = vector.broadcast %cst_40 : f32 to vector<8x20xf32>
    %99 = arith.select %97, %23, %98 : vector<8x20xi1>, vector<8x20xf32>
    %100 = arith.addf %85, %99 : vector<8x20xf32>
    %cst_41 = arith.constant dense<0.000000e+00> : vector<8x128xf32>
    %101 = tpu.matmul %100, %15, %cst_41 {dimension_numbers = #tpu.dot_dimension_numbers<[1], [0], [0], [1], [0, 0, 1, 1], [], []>} : vector<8x20xf32>, vector<20x128xf32>, vector<8x128xf32> -> vector<8x128xf32>
    %102 = tpu.reciprocal %25 : vector<8x1xf32> -> vector<8x1xf32>
    %103 = vector.broadcast %102 : vector<8x1xf32> to vector<8x128xf32>
    %104 = arith.mulf %101, %103 : vector<8x128xf32>
    %cst_42 = arith.constant dense<0.000000e+00> : vector<8x32xf32>
    %105 = tpu.matmul %104, %6, %cst_42 {dimension_numbers = #tpu.dot_dimension_numbers<[1], [0], [0], [1], [0, 0, 1, 1], [], []>} : vector<8x128xf32>, vector<128x32xf32>, vector<8x32xf32> -> vector<8x32xf32>
    %106 = vector.broadcast %7 : vector<1x32xf32> to vector<8x32xf32>
    %107 = arith.addf %105, %106 : vector<8x32xf32>
    %c0_43 = arith.constant 0 : index
    %c0_44 = arith.constant 0 : index
    %108 = vector.load %arg4[%c0_43, %c0_44] : memref<8x32xf32, #tpu.memory_space<vmem>>, vector<8x32xf32>
    tpu.vector_store %arg4[%c0_43, %c0_44], %107 {strides = array<i32>} : memref<8x32xf32, #tpu.memory_space<vmem>>, vector<8x32xf32>,
    return
  }
  func.func @transform_0(%arg0: i32) -> (i32, i32) {
    %c0_i32 = arith.constant 0 : i32
    %c0_i32_0 = arith.constant 0 : i32
    return %arg0, %c0_i32 : i32, i32
  }
  func.func @transform_1(%arg0: i32) -> (i32, i32) {
    %c0_i32 = arith.constant 0 : i32
    %c0_i32_0 = arith.constant 0 : i32
    %c0_i32_1 = arith.constant 0 : i32
    return %c0_i32, %c0_i32_0 : i32, i32
  }
  func.func @transform_2(%arg0: i32) -> (i32, i32) {
    %c0_i32 = arith.constant 0 : i32
    %c0_i32_0 = arith.constant 0 : i32
    %c0_i32_1 = arith.constant 0 : i32
    return %c0_i32, %c0_i32_0 : i32, i32
  }
  func.func @transform_3(%arg0: i32) -> (i32, i32) {
    %c0_i32 = arith.constant 0 : i32
    %c0_i32_0 = arith.constant 0 : i32
    return %arg0, %c0_i32 : i32, i32
  }
}

</mosaic_0001>

<llo_original>
// kernel: tpu_custom_call.1
$region0: #{tpu_custom_call.1}
  #allocation0 [shape = 'u32[]', space=smem, size = 0x4, offset = 0x4, fixed_abs, tag = 'smem constant byte address 0x4 - core index']
  #allocation1 [shape = 'u32[72,128]{1,0:T(1,128)}', space=vmem, size = 0x9000, scoped, tag = 'internal scratch']
  %s0 = inlined_call_operand.hbm [shape: f32[16,32], index: 0, kind: input, shape index: {}]
  %s1 = inlined_call_operand.hbm [shape: f32[20,32], index: 1, kind: input, shape index: {}]
  %s2 = inlined_call_operand.hbm [shape: f32[129,416], index: 2, kind: input, shape index: {}]
  %s3 = inlined_call_operand.hbm [shape: f32[16,32], index: 3, kind: output, shape index: {}]
  %s4 = sld [smem:[#allocation0]]
  $region57: #{tpu_custom_call.1} parent=0
    _
  %s6 = ssub.s32 1, %s4
  %s7 = scalar_select 0, %s6, %s4
  $region1: #{tpu_custom_call.1} parent=0
    #allocation2 [shape = 'u8[8192]{0}', space=vmem, size = 0x2000, scoped, tag = 'input window, operand 0']
    #allocation3 [shape = 's32[2]{0}', space=sflag, size = 0x8, scoped, tag = 'scoped memory for tpu_custom_call.1']
    #allocation4 [shape = 's32[2]{0}', space=sflag, size = 0x8, scoped, tag = 'scoped memory for tpu_custom_call.1']
    #allocation5 [shape = 'u8[12288]{0}', space=vmem, size = 0x3000, scoped, tag = 'input window, operand 1, single buffered']
    #allocation6 [shape = 's32[1]{0}', space=sflag, size = 0x4, scoped, tag = 'scoped memory for tpu_custom_call.1']
    #allocation7 [shape = 'u8[278528]{0}', space=vmem, size = 0x44000, scoped, tag = 'input window, operand 2, single buffered']
    #allocation8 [shape = 'u8[8192]{0}', space=vmem, size = 0x2000, scoped, tag = 'output window, operand 0']
    %8 = vsyncpa [#allocation3], 0
    %s9 = scalar_lea.sflag [#allocation3], 1
    %10 = vsyncpa %s9, 0
    %11 = vsyncpa [#allocation6], 0
    %12 = vsyncpa [#allocation4], 0
    %s13 = scalar_lea.sflag [#allocation4], 1
    %14 = vsyncpa %s13, 0
    loop: start=0, step=1, limit=4
    $region2: #{tpu_custom_call.1} parent=1 // loop_pre_header
      _
    $region3: #{tpu_custom_call.1} parent=1 // loop_header
      %s16 = sphi 0, %s20
      %p17 = scmp.ge.s32.totalorder %s16, 4
      %s26 = sphi 0, %s28
      %s29 = sphi 0, %s26
      %s30 = sphi 0, %s29
      %s46 = sphi 0, %s30
      %s50 = sphi 0, %s50
      %s52 = sphi 0, %s50
      %s53 = sphi 0, %s52
      %s67 = sphi 0, %s53
      %s71 = sphi 0, %s71
      %s73 = sphi 0, %s71
      %s74 = sphi 0, %s73
      %s88 = sphi 0, %s74
      %s94 = sphi 0, %s96
      %s97 = sphi 0, %s94
      %s98 = sphi 0, %s97
      %s114 = sphi 0, %s98
    $region4: #{tpu_custom_call.1} parent=1 // loop_header_branch
      %19 = sbr.rel (%p17) target = $region8
    $region5: #{tpu_custom_call.1} parent=1 // loop_body
      %s21 = ssub.s32 %s16, 1
      %s22 = ssub.s32 %s16, 2
      %s23 = sadd.s32 %s16, 1
      %s24 = ssub.s32 %s16, %s23
      %p25 = scmp.eq.s32.totalorder %s24, 0
      %s27 = sadd.s32 %s26, 1
      %s28 = scalar_select %p25, %s26, %s27
      %p31 = pneg %p25
      %p32 = scmp.eq.s32.totalorder %s16, 1
      %p33 = por %p31, %p32
      %p34 = scmp.ne.s32.totalorder %s26, %s29
      %p35 = scmp.eq.s32.totalorder %s16, 0
      %p36 = por %p34, %p35
      %p37 = scmp.ne.s32.totalorder %s26, %s29
      %p38 = scmp.eq.s32.totalorder %s21, 1
      %p39 = por %p37, %p38
      %p40 = scmp.ne.s32.totalorder %s29, %s30
      %p41 = scmp.eq.s32.totalorder %s21, 0
      %p42 = por %p40, %p41
      %p43 = scmp.ne.s32.totalorder %s29, %s30
      %p44 = scmp.eq.s32.totalorder %s22, 1
      %p45 = por %p43, %p44
      %p47 = scmp.ne.s32.totalorder %s30, %s46
      %p48 = scmp.eq.s32.totalorder %s22, 0
      %p49 = por %p47, %p48
      %s51 = sadd.s32 %s50, 1
      %p54 = scmp.eq.s32.totalorder %s16, 1
      %p55 = scmp.ne.s32.totalorder %s50, %s52
      %p56 = scmp.eq.s32.totalorder %s16, 0
      %p57 = por %p55, %p56
      %p58 = scmp.ne.s32.totalorder %s50, %s52
      %p59 = scmp.eq.s32.totalorder %s21, 1
      %p60 = por %p58, %p59
      %p61 = scmp.ne.s32.totalorder %s52, %s53
      %p62 = scmp.eq.s32.totalorder %s21, 0
      %p63 = por %p61, %p62
      %p64 = scmp.ne.s32.totalorder %s52, %s53
      %p65 = scmp.eq.s32.totalorder %s22, 1
      %p66 = por %p64, %p65
      %p68 = scmp.ne.s32.totalorder %s53, %s67
      %p69 = scmp.eq.s32.totalorder %s22, 0
      %p70 = por %p68, %p69
      %s72 = sadd.s32 %s71, 1
      %p75 = scmp.eq.s32.totalorder %s16, 1
      %p76 = scmp.ne.s32.totalorder %s71, %s73
      %p77 = scmp.eq.s32.totalorder %s16, 0
      %p78 = por %p76, %p77
      %p79 = scmp.ne.s32.totalorder %s71, %s73
      %p80 = scmp.eq.s32.totalorder %s21, 1
      %p81 = por %p79, %p80
      %p82 = scmp.ne.s32.totalorder %s73, %s74
      %p83 = scmp.eq.s32.totalorder %s21, 0
      %p84 = por %p82, %p83
      %p85 = scmp.ne.s32.totalorder %s73, %s74
      %p86 = scmp.eq.s32.totalorder %s22, 1
      %p87 = por %p85, %p86
      %p89 = scmp.ne.s32.totalorder %s74, %s88
      %p90 = scmp.eq.s32.totalorder %s22, 0
      %p91 = por %p89, %p90
      %s92 = ssub.s32 %s16, %s23
      %p93 = scmp.eq.s32.totalorder %s92, 0
      %s95 = sadd.s32 %s94, 1
      %s96 = scalar_select %p93, %s94, %s95
      %p99 = pneg %p93
      %p100 = scmp.eq.s32.totalorder %s16, 1
      %p101 = por %p99, %p100
      %p102 = scmp.ne.s32.totalorder %s94, %s97
      %p103 = scmp.eq.s32.totalorder %s16, 0
      %p104 = por %p102, %p103
      %p105 = scmp.ne.s32.totalorder %s94, %s97
      %p106 = scmp.eq.s32.totalorder %s21, 1
      %p107 = por %p105, %p106
      %p108 = scmp.ne.s32.totalorder %s97, %s98
      %p109 = scmp.eq.s32.totalorder %s21, 0
      %p110 = por %p108, %p109
      %p111 = scmp.ne.s32.totalorder %s97, %s98
      %p112 = scmp.eq.s32.totalorder %s22, 1
      %p113 = por %p111, %p112
      %p115 = scmp.ne.s32.totalorder %s98, %s114
      %p116 = scmp.eq.s32.totalorder %s22, 0
      %p117 = por %p115, %p116
      %p118 = scmp.le.s32.totalorder 1, %s16
      %p119 = scmp.lt.s32.totalorder %s16, 3
      %p120 = pnand %p118, %p119
      %p121 = pneg %p120
      // Predicated region
      $region9: #{tpu_custom_call.1} parent=5 // pred_check
        _
      $region10: #{tpu_custom_call.1} parent=5 // pred_check_branch
        %123 = sbr.rel (%p120) target = $region12
      $region11: #{tpu_custom_call.1} parent=5 // pred_region
        %s124 = ssub.s32 %s16, 1
        // Predicated region
        $region13: #{tpu_custom_call.1} parent=11 // pred_check
          %p125 = pneg %p63
        $region14: #{tpu_custom_call.1} parent=11 // pred_check_branch
          %127 = sbr.rel (%p125) target = $region16
        $region15: #{tpu_custom_call.1} parent=11 // pred_region
          %129 = vsyncadd [#allocation6], 0
          %s130 = sshll.u32 %s1, 4
          %s131 = int_to_ptr.hbm [resolvable:$true] %s130
          %s132 = sshll.u32 [#allocation5], 4
          %s133 = int_to_ptr.vmem [resolvable:$true] %s132
          %138 = dma.hbm_to_vmem [thread:$0]  %s131, 384, %s133, [#allocation6], 128, 128, 8
        $region16: #{tpu_custom_call.1} parent=11 // pred_fallthru
          _
        // Predicated region
        $region17: #{tpu_custom_call.1} parent=11 // pred_check
          %p139 = pneg %p84
        $region18: #{tpu_custom_call.1} parent=11 // pred_check_branch
          %141 = sbr.rel (%p139) target = $region20
        $region19: #{tpu_custom_call.1} parent=11 // pred_region
          %143 = vsyncadd [#allocation6], 0
          %s144 = sshll.u32 %s2, 4
          %s145 = int_to_ptr.hbm [resolvable:$true] %s144
          %s146 = sshll.u32 [#allocation7], 4
          %s147 = int_to_ptr.vmem [resolvable:$true] %s146
          %152 = dma.hbm_to_vmem [thread:$0]  %s145, 8704, %s147, [#allocation6], 512, 512, 32
        $region20: #{tpu_custom_call.1} parent=11 // pred_fallthru
          _
      $region12: #{tpu_custom_call.1} parent=5 // pred_fallthru
        _
      %p153 = scmp.lt.s32.totalorder %s16, 2
      // Predicated region
      $region21: #{tpu_custom_call.1} parent=5 // pred_check
        %p154 = pneg %p153
      $region22: #{tpu_custom_call.1} parent=5 // pred_check_branch
        %156 = sbr.rel (%p154) target = $region24
      $region23: #{tpu_custom_call.1} parent=5 // pred_region
        // Predicated region
        $region25: #{tpu_custom_call.1} parent=23 // pred_check
          %p157 = pneg %p36
        $region26: #{tpu_custom_call.1} parent=23 // pred_check_branch
          %159 = sbr.rel (%p157) target = $region28
        $region27: #{tpu_custom_call.1} parent=23 // pred_region
          %s160 = sand.u32 %s26, 1
          %s161 = scalar_lea.sflag [#allocation3], %s160
          %s162 = sand.u32 %s26, 1
          %s163 = smul.addr %s162, 8
          %s164 = scalar_lea.vmem [#allocation2], %s163
          %166 = vsyncadd %s161, 0
          %s167 = smul.addr %s16, 8
          %s168 = scalar_lea.hbm %s0, %s167
          %s170 = sshll.u32 %s168, 4
          %s171 = int_to_ptr.hbm [resolvable:$true] %s170
          %s172 = sshll.u32 %s164, 4
          %s173 = int_to_ptr.vmem [resolvable:$true] %s172
          %175 = dma.hbm_to_vmem [thread:$0]  %s171, 128, %s173, %s161
        $region28: #{tpu_custom_call.1} parent=23 // pred_fallthru
          _
      $region24: #{tpu_custom_call.1} parent=5 // pred_fallthru
        _
      %p176 = scmp.le.s32.totalorder 1, %s16
      %p177 = scmp.lt.s32.totalorder %s16, 3
      %p178 = pnand %p176, %p177
      %p179 = pneg %p178
      // Predicated region
      $region29: #{tpu_custom_call.1} parent=5 // pred_check
        _
      $region30: #{tpu_custom_call.1} parent=5 // pred_check_branch
        %181 = sbr.rel (%p178) target = $region32
      $region31: #{tpu_custom_call.1} parent=5 // pred_region
        %s182 = ssub.s32 %s16, 1
        %s183 = sand.u32 %s29, 1
        %s184 = scalar_lea.sflag [#allocation3], %s183
        %s185 = sand.u32 %s29, 1
        %s186 = smul.addr %s185, 8
        %s187 = scalar_lea.vmem [#allocation2], %s186
        // Predicated region
        $region33: #{tpu_custom_call.1} parent=31 // pred_check
          %p188 = pneg %p42
        $region34: #{tpu_custom_call.1} parent=31 // pred_check_branch
          %190 = sbr.rel (%p188) target = $region36
        $region35: #{tpu_custom_call.1} parent=31 // pred_region
          %192 = dma.done %s184, 128
        $region36: #{tpu_custom_call.1} parent=31 // pred_fallthru
          _
        // Predicated region
        $region37: #{tpu_custom_call.1} parent=31 // pred_check
          %p193 = pneg %p63
        $region38: #{tpu_custom_call.1} parent=31 // pred_check_branch
          %195 = sbr.rel (%p193) target = $region40
        $region39: #{tpu_custom_call.1} parent=31 // pred_region
          %197 = dma.done [#allocation6], 384
        $region40: #{tpu_custom_call.1} parent=31 // pred_fallthru
          _
        // Predicated region
        $region41: #{tpu_custom_call.1} parent=31 // pred_check
          %p198 = pneg %p84
        $region42: #{tpu_custom_call.1} parent=31 // pred_check_branch
          %200 = sbr.rel (%p198) target = $region44
        $region43: #{tpu_custom_call.1} parent=31 // pred_region
          %202 = dma.done [#allocation6], 8704
        $region44: #{tpu_custom_call.1} parent=31 // pred_fallthru
          _
        %s203 = sand.u32 %s29, 1
        %s204 = scalar_lea.sflag [#allocation3], %s203
        %s205 = sand.u32 %s29, 1
        %s206 = smul.addr %s205, 8
        %s207 = scalar_lea.vmem [#allocation2], %s206
        %p208 = pneg %p42
        %p209 = pneg %p39
        %p210 = pneg %p63
        %p211 = pneg %p60
        %p212 = pneg %p84
        %p213 = pneg %p81
        %p214 = pneg %p110
        %p215 = pneg %p107
        %s216 = sand.u32 %s97, 1
        %s217 = scalar_lea.sflag [#allocation4], %s216
        %s218 = sand.u32 %s97, 1
        %s219 = smul.addr %s218, 8
        %s220 = scalar_lea.vmem [#allocation8], %s219
        %v221 = vld [vmem:[%s187] sm:$0xff]
        %v222 = vld [vmem:[#allocation5] sm:$0xff]
        %v223 = vld [vmem:[#allocation5 + $0x8] sm:$0xff]
        %v224 = vld [vmem:[#allocation5 + $0x10] sm:$0xf]
        %v225 = vld [vmem:[#allocation7] sm:$0xff]
        %v226 = vld [vmem:[#allocation7 + $0x20] sm:$0xff]
        %v227 = vld [vmem:[#allocation7 + $0x40] sm:$0xff]
        %v228 = vld [vmem:[#allocation7 + $0x60] sm:$0xff]
        %v229 = vld [vmem:[#allocation7 + $0x8] sm:$0xff]
        %v230 = vld [vmem:[#allocation7 + $0x10] sm:$0xff]
        %v231 = vld [vmem:[#allocation7 + $0x28] sm:$0xff]
        %v232 = vld [vmem:[#allocation7 + $0x30] sm:$0xff]
        %v233 = vld [vmem:[#allocation7 + $0x48] sm:$0xff]
        %v234 = vld [vmem:[#allocation7 + $0x50] sm:$0xff]
        %v235 = vld [vmem:[#allocation7 + $0x68] sm:$0xff]
        %v236 = vld [vmem:[#allocation7 + $0x70] sm:$0xff]
        %v237 = vld [vmem:[#allocation7 + $0x80] ss:$0 sm:$0xff]
        %s238 = scalar_lea.vmem [#allocation7], 136
        %v239 = vld [vmem:[%s238] ss:$8 sm:$0x3]
        %v240 = vld [vmem:[#allocation7 + $0x18] sm:$0xff]
        %v241 = vld [vmem:[#allocation7 + $0x38] sm:$0xff]
        %v242 = vld [vmem:[#allocation7 + $0x58] sm:$0xff]
        %v243 = vld [vmem:[#allocation7 + $0x78] sm:$0xff]
        %v244 = vld [vmem:[#allocation7 + $0x98] sm:$0xff]
        %v245 = vld [vmem:[#allocation7 + $0xb8] sm:$0xff]
        %v246 = vld [vmem:[#allocation7 + $0xd8] sm:$0xff]
        %v247 = vld [vmem:[#allocation7 + $0xf8] sm:$0xff]
        %v248 = vld [vmem:[#allocation7 + $0x118] sm:$0xff]
        %v249 = vld [vmem:[#allocation7 + $0x138] sm:$0xff]
        %v250 = vld [vmem:[#allocation7 + $0x158] sm:$0xff]
        %v251 = vld [vmem:[#allocation7 + $0x178] sm:$0xff]
        %v252 = vld [vmem:[#allocation7 + $0x198] sm:$0xff]
        %v253 = vld [vmem:[#allocation7 + $0x1b8] sm:$0xff]
        %v254 = vld [vmem:[#allocation7 + $0x1d8] sm:$0xff]
        %v255 = vld [vmem:[#allocation7 + $0x1f8] sm:$0xff]
        %v256 = vld [vmem:[#allocation7 + $0x218] ss:$0 sm:$0xff]
        %vm257 = vcmask 261120
        %v259 = vsel %vm257, %v221, 0
        %261 = vmatpush.msra.mxu0 0.0
        %262 = vmatpush.msra.mxu0 0.0
        %263 = vmatpush.msra.mxu0 0.0
        %264 = vmatpush.msra.mxu0 0.0
        %265 = vmatpush.msra.mxu0 0.0
        %266 = vmatpush.msra.mxu0 0.0
        %267 = vmatpush.msra.mxu0 0.0
        %268 = vmatpush.msra.mxu0 0.0
        %269 = vmatpush.msra.mxu0 0.0
        %270 = vmatpush.msra.mxu0 0.0
        %271 = vmatpush.msra.mxu0 0.0
        %272 = vmatpush.msra.mxu0 0.0
        %273 = vmatpush.msra.mxu0 %v228
        %274 = vmatpush.msra.mxu0 %v227
        %275 = vmatpush.msra.mxu0 %v226
        %276 = vmatpush.msra.mxu0 %v225
        %277 = vmatmul.f32.gmra.mxu0 %v259
        %v278 = vpop.f32.mrf.mxu0
        %v279 = vadd.f32 %v237, %v278
        %280 = vdwg.mxu0
        %v282 = vperm.slane %v239, 0
        %v283 = vperm.slane %v239, 1
        %v287 = vsel %vm257, %v222, 0
        %v290 = vsel %vm257, %v223, 0
        %v293 = vsel %vm257, %v224, 0
        %295 = vmatpush.msra.mxu0 0.0
        %296 = vmatpush.msra.mxu0 0.0
        %297 = vmatpush.msra.mxu0 0.0
        %298 = vmatpush.msra.mxu0 0.0
        %299 = vmatpush.msra.mxu0 0.0
        %300 = vmatpush.msra.mxu0 0.0
        %301 = vmatpush.msra.mxu0 0.0
        %302 = vmatpush.msra.mxu0 0.0
        %303 = vmatpush.msra.mxu0 0.0
        %304 = vmatpush.msra.mxu0 0.0
        %305 = vmatpush.msra.mxu0 0.0
        %306 = vmatpush.msra.mxu0 0.0
        %307 = vmatpush.msra.mxu0 %v235
        %308 = vmatpush.msra.mxu0 %v233
        %309 = vmatpush.msra.mxu0 %v231
        %310 = vmatpush.msra.mxu0 %v229
        %311 = vmatmul.f32.gmra.mxu0 %v287
        %v312 = vpop.f32.mrf.mxu0
        %v313 = vadd.f32 %v282, %v312
        %314 = vmatmul.f32.gmra.mxu0 %v290
        %v315 = vpop.f32.mrf.mxu0
        %v316 = vadd.f32 %v282, %v315
        %317 = vmatmul.f32.gmra.mxu0 %v293
        %v318 = vpop.f32.mrf.mxu0
        %v319 = vadd.f32 %v282, %v318
        %320 = vdwg.mxu0
        %321 = vmatpush.msra.mxu0 0.0
        %322 = vmatpush.msra.mxu0 0.0
        %323 = vmatpush.msra.mxu0 0.0
        %324 = vmatpush.msra.mxu0 0.0
        %325 = vmatpush.msra.mxu0 0.0
        %326 = vmatpush.msra.mxu0 0.0
        %327 = vmatpush.msra.mxu0 0.0
        %328 = vmatpush.msra.mxu0 0.0
        %329 = vmatpush.msra.mxu0 0.0
        %330 = vmatpush.msra.mxu0 0.0
        %331 = vmatpush.msra.mxu0 0.0
        %332 = vmatpush.msra.mxu0 0.0
        %333 = vmatpush.msra.mxu0 %v236
        %334 = vmatpush.msra.mxu0 %v234
        %335 = vmatpush.msra.mxu0 %v232
        %336 = vmatpush.msra.mxu0 %v230
        %337 = vmatmul.f32.gmra.mxu0 %v287
        %v338 = vpop.f32.mrf.mxu0
        %v339 = vadd.f32 %v283, %v338
        %340 = vmatmul.f32.gmra.mxu0 %v290
        %v341 = vpop.f32.mrf.mxu0
        %v342 = vadd.f32 %v283, %v341
        %343 = vmatmul.f32.gmra.mxu0 %v293
        %v344 = vpop.f32.mrf.mxu0
        %v345 = vadd.f32 %v283, %v344
        %346 = vdwg.mxu0
        %347 = vmatpush.xpose.msra.mxu0 0.0
        %348 = vmatpush.xpose.msra.mxu0 0.0
        %349 = vmatpush.xpose.msra.mxu0 0.0
        %350 = vmatpush.xpose.msra.mxu0 0.0
        %351 = vmatpush.xpose.msra.mxu0 0.0
        %352 = vmatpush.xpose.msra.mxu0 0.0
        %353 = vmatpush.xpose.msra.mxu0 0.0
        %354 = vmatpush.xpose.msra.mxu0 0.0
        %355 = vmatpush.xpose.msra.mxu0 0.0
        %356 = vmatpush.xpose.msra.mxu0 0.0
        %357 = vmatpush.xpose.msra.mxu0 0.0
        %358 = vmatpush.xpose.msra.mxu0 0.0
        %359 = vmatpush.xpose.msra.mxu0 0.0
        %360 = vmatpush.xpose.msra.mxu0 %v319
        %361 = vmatpush.xpose.msra.mxu0 %v316
        %362 = vmatpush.xpose.msra.mxu0 %v313
        %363 = vmatmul.f32.gmra.mxu0 %v279
        %v364 = vpop.f32.mrf.mxu0
        %v365 = vadd.f32 0.0, %v364
        %366 = vdwg.mxu0
        %v367 = vmul.f32 %v365, 0.17677669
        %vm368 = vcmask 162816
        %v369 = vsel %vm368, %v367, -inf
        %370 = vmax.xlane.f32.xlu0 %v369
        %v371 = vpop.xlane.xlu0 %370
        %v372 = vsub.f32 %v367, %v371
        %v373 = vmul.f32 %v372, 1.442695
        %v374 = vpow.pop %v373
        %v375 = vsel %vm368, %v374, 0.0
        %376 = vadd.xlane.f32.xlu0 %v375
        %v377 = vpop.xlane.xlu0 %376
        %v378 = vlaneseq
        %v379 = vand.u32 %v378, 127
        %v380 = vsel %vm368, %v374, -inf
        %381 = vmax.xlane.f32.xlu0 %v380
        %v382 = vpop.xlane.xlu0 %381
        %vm383 = vcmp.eq.f32.partialorder %v374, %v382
        %v384 = vsel %vm383, %v379, 20
        %v385 = vsel %vm368, %v384, 2147483647
        %v386 = vand.u32 %v385, 65535
        %v387 = vshra.s32 %v385, 16
        %v388 = vcvt.s32.f32 %v386
        %v389 = vcvt.s32.f32 %v387
        %390 = vmin.xlane.f32.xlu0 %v389
        %v391 = vpop.xlane.xlu0 %390
        %vm392 = vcmp.eq.f32.partialorder %v389, %v391
        %v393 = vsel %vm392, %v388, inf
        %394 = vmin.xlane.f32.xlu0 %v393
        %v395 = vpop.xlane.xlu0 %394
        %v396 = vcvt.f32.s32 %v395
        %v397 = vcvt.f32.s32 %v391
        %v398 = vshll.u32 %v397, 16
        %v399 = vadd.s32 %v398, %v396
        %vm400 = vcmp.eq.s32.totalorder %v379, %v399
        %v401 = vsel %vm400, %v374, 0.0
        %v402 = vadd.f32 %v401, 0.0
        %v403 = vsel %vm400, -inf, %v374
        %v404 = vsel %vm368, %v403, -inf
        %405 = vmax.xlane.f32.xlu0 %v404
        %v406 = vpop.xlane.xlu0 %405
        %vm407 = vcmp.eq.f32.partialorder %v403, %v406
        %v408 = vsel %vm407, %v379, 20
        %v409 = vsel %vm368, %v408, 2147483647
        %v410 = vand.u32 %v409, 65535
        %v411 = vshra.s32 %v409, 16
        %v412 = vcvt.s32.f32 %v410
        %v413 = vcvt.s32.f32 %v411
        %414 = vmin.xlane.f32.xlu0 %v413
        %v415 = vpop.xlane.xlu0 %414
        %vm416 = vcmp.eq.f32.partialorder %v413, %v415
        %v417 = vsel %vm416, %v412, inf
        %418 = vmin.xlane.f32.xlu0 %v417
        %v419 = vpop.xlane.xlu0 %418
        %v420 = vcvt.f32.s32 %v419
        %v421 = vcvt.f32.s32 %v415
        %v422 = vshll.u32 %v421, 16
        %v423 = vadd.s32 %v422, %v420
        %vm424 = vcmp.eq.s32.totalorder %v379, %v423
        %v425 = vsel %vm424, %v374, 0.0
        %v426 = vadd.f32 %v402, %v425
        %v427 = vsel %vm424, -inf, %v403
        %v428 = vsel %vm368, %v427, -inf
        %429 = vmax.xlane.f32.xlu0 %v428
        %v430 = vpop.xlane.xlu0 %429
        %vm431 = vcmp.eq.f32.partialorder %v427, %v430
        %v432 = vsel %vm431, %v379, 20
        %v433 = vsel %vm368, %v432, 2147483647
        %v434 = vand.u32 %v433, 65535
        %v435 = vshra.s32 %v433, 16
        %v436 = vcvt.s32.f32 %v434
        %v437 = vcvt.s32.f32 %v435
        %438 = vmin.xlane.f32.xlu0 %v437
        %v439 = vpop.xlane.xlu0 %438
        %vm440 = vcmp.eq.f32.partialorder %v437, %v439
        %v441 = vsel %vm440, %v436, inf
        %442 = vmin.xlane.f32.xlu0 %v441
        %v443 = vpop.xlane.xlu0 %442
        %v444 = vcvt.f32.s32 %v443
        %v445 = vcvt.f32.s32 %v439
        %v446 = vshll.u32 %v445, 16
        %v447 = vadd.s32 %v446, %v444
        %vm448 = vcmp.eq.s32.totalorder %v379, %v447
        %v449 = vsel %vm448, %v374, 0.0
        %v450 = vadd.f32 %v426, %v449
        %v451 = vsel %vm448, -inf, %v427
        %v452 = vsel %vm368, %v451, -inf
        %453 = vmax.xlane.f32.xlu0 %v452
        %v454 = vpop.xlane.xlu0 %453
        %vm455 = vcmp.eq.f32.partialorder %v451, %v454
        %v456 = vsel %vm455, %v379, 20
        %v457 = vsel %vm368, %v456, 2147483647
        %v458 = vand.u32 %v457, 65535
        %v459 = vshra.s32 %v457, 16
        %v460 = vcvt.s32.f32 %v458
        %v461 = vcvt.s32.f32 %v459
        %462 = vmin.xlane.f32.xlu0 %v461
        %v463 = vpop.xlane.xlu0 %462
        %vm464 = vcmp.eq.f32.partialorder %v461, %v463
        %v465 = vsel %vm464, %v460, inf
        %466 = vmin.xlane.f32.xlu0 %v465
        %v467 = vpop.xlane.xlu0 %466
        %v468 = vcvt.f32.s32 %v467
        %v469 = vcvt.f32.s32 %v463
        %v470 = vshll.u32 %v469, 16
        %v471 = vadd.s32 %v470, %v468
        %vm472 = vcmp.eq.s32.totalorder %v379, %v471
        %v473 = vsel %vm472, %v374, 0.0
        %v474 = vadd.f32 %v450, %v473
        %v475 = vsel %vm472, -inf, %v451
        %v476 = vsel %vm368, %v475, -inf
        %477 = vmax.xlane.f32.xlu0 %v476
        %v478 = vpop.xlane.xlu0 %477
        %vm479 = vcmp.eq.f32.partialorder %v475, %v478
        %v480 = vsel %vm479, %v379, 20
        %v481 = vsel %vm368, %v480, 2147483647
        %v482 = vand.u32 %v481, 65535
        %v483 = vshra.s32 %v481, 16
        %v484 = vcvt.s32.f32 %v482
        %v485 = vcvt.s32.f32 %v483
        %486 = vmin.xlane.f32.xlu0 %v485
        %v487 = vpop.xlane.xlu0 %486
        %vm488 = vcmp.eq.f32.partialorder %v485, %v487
        %v489 = vsel %vm488, %v484, inf
        %490 = vmin.xlane.f32.xlu0 %v489
        %v491 = vpop.xlane.xlu0 %490
        %v492 = vcvt.f32.s32 %v491
        %v493 = vcvt.f32.s32 %v487
        %v494 = vshll.u32 %v493, 16
        %v495 = vadd.s32 %v494, %v492
        %vm496 = vcmp.eq.s32.totalorder %v379, %v495
        %v497 = vsel %vm496, %v374, 0.0
        %v498 = vadd.f32 %v474, %v497
        %v500 = vsel %vm368, %v498, 0
        %vm502 = vcmask 1043456
        %v504 = vsel %vm502, %v345, 0
        %506 = vmatpush.msra.mxu0 0.0
        %507 = vmatpush.msra.mxu0 0.0
        %508 = vmatpush.msra.mxu0 0.0
        %509 = vmatpush.msra.mxu0 0.0
        %510 = vmatpush.msra.mxu0 0.0
        %511 = vmatpush.msra.mxu0 0.0
        %512 = vmatpush.msra.mxu0 0.0
        %513 = vmatpush.msra.mxu0 0.0
        %514 = vmatpush.msra.mxu0 0.0
        %515 = vmatpush.msra.mxu0 0.0
        %516 = vmatpush.msra.mxu0 0.0
        %517 = vmatpush.msra.mxu0 0.0
        %518 = vmatpush.msra.mxu0 0.0
        %519 = vmatpush.msra.mxu0 %v504
        %520 = vmatpush.msra.mxu0 %v342
        %521 = vmatpush.msra.mxu0 %v339
        %522 = vmatmul.f32.gmra.mxu0 %v500
        %v523 = vpop.f32.mrf.mxu0
        %v524 = vadd.f32 0.0, %v523
        %525 = vdwg.mxu0
        %v526 = vrcp.pop %v377
        %v527 = vmul.f32 %v377, %v526
        %v528 = vsub.f32 1.0, %v527
        %v529 = vmul.f32 %v526, %v528
        %v530 = vadd.f32 %v526, %v529
        %vm531 = vweird.f32 %v377
        %vm532 = vweird.f32 %v526
        %vm533 = vmor %vm531, %vm532
        %v534 = vsel %vm533, %v526, %v530
        %v535 = vand.u32 2147483647, %v377
        %vm536 = vcmp.eq.f32.partialorder %v535, 8.507059e+37
        %v537 = vand.u32 %v377, 2147483648
        %v538 = vor.u32 1.1754944e-38, %v537
        %v539 = vsel %vm536, %v538, %v534
        %v540 = vmul.f32 %v524, %v539
        %541 = vmatpush.msra.mxu0 %v255
        %542 = vmatpush.msra.mxu0 %v254
        %543 = vmatpush.msra.mxu0 %v253
        %544 = vmatpush.msra.mxu0 %v252
        %545 = vmatpush.msra.mxu0 %v251
        %546 = vmatpush.msra.mxu0 %v250
        %547 = vmatpush.msra.mxu0 %v249
        %548 = vmatpush.msra.mxu0 %v248
        %549 = vmatpush.msra.mxu0 %v247
        %550 = vmatpush.msra.mxu0 %v246
        %551 = vmatpush.msra.mxu0 %v245
        %552 = vmatpush.msra.mxu0 %v244
        %553 = vmatpush.msra.mxu0 %v243
        %554 = vmatpush.msra.mxu0 %v242
        %555 = vmatpush.msra.mxu0 %v241
        %556 = vmatpush.msra.mxu0 %v240
        %557 = vmatmul.f32.gmra.mxu0 %v540
        %v558 = vpop.f32.mrf.mxu0
        %v559 = vadd.f32 %v256, %v558
        %560 = vdwg.mxu0
        %561 = vst.msk [vmem:[%s220] sm:$0xff] %vm257, %v559
        %s562 = sand.u32 %s97, 1
        %s563 = scalar_lea.sflag [#allocation4], %s562
        %s564 = sand.u32 %s97, 1
        %s565 = smul.addr %s564, 8
        %s566 = scalar_lea.vmem [#allocation8], %s565
        // Predicated region
        $region45: #{tpu_custom_call.1} parent=31 // pred_check
          %p567 = pneg %p107
        $region46: #{tpu_custom_call.1} parent=31 // pred_check_branch
          %569 = sbr.rel (%p567) target = $region48
        $region47: #{tpu_custom_call.1} parent=31 // pred_region
          %571 = vsyncadd %s563, 0
          %s572 = smul.addr %s21, 8
          %s573 = scalar_lea.hbm %s3, %s572
          %s575 = sshll.u32 %s566, 4
          %s576 = int_to_ptr.vmem [resolvable:$true] %s575
          %s577 = sshll.u32 %s573, 4
          %s578 = int_to_ptr.hbm [resolvable:$true] %s577
          %580 = dma.vmem_to_hbm [thread:$0]  %s576, 128, %s578, %s563
        $region48: #{tpu_custom_call.1} parent=31 // pred_fallthru
          _
      $region32: #{tpu_custom_call.1} parent=5 // pred_fallthru
        _
      %p581 = scmp.le.s32.totalorder 2, %s16
      // Predicated region
      $region49: #{tpu_custom_call.1} parent=5 // pred_check
        %p582 = pneg %p581
      $region50: #{tpu_custom_call.1} parent=5 // pred_check_branch
        %584 = sbr.rel (%p582) target = $region52
      $region51: #{tpu_custom_call.1} parent=5 // pred_region
        %s585 = ssub.s32 %s16, 2
        // Predicated region
        $region53: #{tpu_custom_call.1} parent=51 // pred_check
          %p586 = pneg %p113
        $region54: #{tpu_custom_call.1} parent=51 // pred_check_branch
          %588 = sbr.rel (%p586) target = $region56
        $region55: #{tpu_custom_call.1} parent=51 // pred_region
          %s589 = sand.u32 %s98, 1
          %s590 = scalar_lea.sflag [#allocation4], %s589
          %s591 = sand.u32 %s98, 1
          %s592 = smul.addr %s591, 8
          %s593 = scalar_lea.vmem [#allocation8], %s592
          %595 = dma.done %s590, 128
        $region56: #{tpu_custom_call.1} parent=51 // pred_fallthru
          _
      $region52: #{tpu_custom_call.1} parent=5 // pred_fallthru
        _
    $region6: #{tpu_custom_call.1} parent=1 // loop_footer
      %s20 = sadd.s32 1, %s16
    $region7: #{tpu_custom_call.1} parent=1 // loop_footer_branch
      %15 = sbr.rel target = $region3
    $region8: #{tpu_custom_call.1} parent=1 // loop_exit
      _
    %596 = vsyncpa [#allocation3], 1
    %s597 = scalar_lea.sflag [#allocation3], 1
    %598 = vsyncpa %s597, 1
    %599 = vsyncpa [#allocation6], 1
    %600 = vsyncpa [#allocation4], 1
    %s601 = scalar_lea.sflag [#allocation4], 1
    %602 = vsyncpa %s601, 1

</llo_original>
